<compile_context>
chip_gen: v5e
topology: v5e:2x2
jax: 0.10.0
libtpu: 0.0.40
codegen_flags: <defaults>
</compile_context>

<pallas_src>
import numpy as np
import jax
import jax.numpy as jnp
from jax.experimental import pallas as pl
from jax.experimental.pallas import tpu as pltpu

SIZES = (1, 2, 3, 6)
ALIGN_CORNERS = False  # current F.upsample / F.interpolate default behaviour
S2 = sum(s * s for s in SIZES)   # 50
S2P = 64                         # sublane-aligned padding of the pyramid axis


# ------------------------------------------------------------------ glue ----
def _adaptive_avg_pool_matrix(in_size, out_size):
    """P[i, j] = weight of input index j in adaptive-avg-pool output i (PyTorch rule)."""
    P = np.zeros((out_size, in_size), dtype=np.float32)
    for i in range(out_size):
        start = (i * in_size) // out_size
        end = -((-(i + 1) * in_size) // out_size)  # ceil((i+1)*in/out)
        P[i, start:end] = 1.0 / float(end - start)
    return P


def _bilinear_upsample_matrix(in_size, out_size, align_corners=ALIGN_CORNERS):
    """U[i, j]: 1-D bilinear interpolation weights, in_size -> out_size."""
    U = np.zeros((out_size, in_size), dtype=np.float32)
    for i in range(out_size):
        if align_corners:
            scale = (in_size - 1) / (out_size - 1) if out_size > 1 else 0.0
            src = scale * i
        else:
            scale = in_size / out_size
            src = max(scale * (i + 0.5) - 0.5, 0.0)
        i0 = min(int(np.floor(src)), in_size - 1)
        i1 = min(i0 + 1, in_size - 1)
        frac = src - i0
        U[i, i0] += 1.0 - frac
        U[i, i1] += frac
    return U


def _stage_operators(H, W, sizes=SIZES):
    """Factored spatial operators, packed across stages.

    Pt_pack (HW, S2): pooled_flat (all stages concat) = x_flat(row) @ Pt_pack
    Ut_pack (S2, HW): upsampled contribution          = pooled(row) @ Ut_pack
    The (HW, HW) kron product is never materialized.
    """
    pts, uts = [], []
    for s in sizes:
        Ph = _adaptive_avg_pool_matrix(H, s)          # (s, H)
        Pw = _adaptive_avg_pool_matrix(W, s)          # (s, W)
        Uh = _bilinear_upsample_matrix(s, H)          # (H, s)
        Uw = _bilinear_upsample_matrix(s, W)          # (W, s)
        P = np.kron(Ph, Pw)                           # (s*s, HW)
        U = np.kron(Uh, Uw)                           # (HW, s*s)
        pts.append(P.T)                               # (HW, s*s)
        uts.append(U.T)                               # (s*s, HW)
    return np.concatenate(pts, axis=1), np.concatenate(uts, axis=0)


# ---------------------------------------------------------------- kernel ----
def _psp_kernel(x_ref, ut_ref, proj_ref, wid_ref, bias_ref, o_ref):
    """Per (image b, lane tile j):
         x_ref    (C,   THW)  bf16   lane tile of the input feature map
         ut_ref   (S2P, THW)  bf16   packed upsample operator, lane tile
         proj_ref (OUT, S2P)  bf16   per-image pooled+projected pyramid features
         wid_ref  (OUT, C)    bf16   identity-branch block of the bottleneck conv
         bias_ref (OUT, 1)    f32    bottleneck bias
         o_ref    (OUT, THW)  f32
    """
    acc = jnp.dot(wid_ref[...], x_ref[...],
                  preferred_element_type=jnp.float32)            # (OUT, THW) f32
    acc = acc + jnp.dot(proj_ref[...], ut_ref[...],
                        preferred_element_type=jnp.float32)      # (OUT, THW)
    acc = acc + bias_ref[...]                                    # (OUT, 1) bcast
    o_ref[...] = jnp.maximum(acc, 0.0).astype(o_ref.dtype)       # ReLU


def _tile_vmem_bytes(C, OUT, thw):
    """Rough double-buffered VMEM footprint of one grid step."""
    x_b = 2 * C * thw * 2        # bf16 input tile
    ut_b = 2 * S2P * thw * 2     # bf16 upsample tile
    out_b = 2 * OUT * thw * 4    # f32 output tile
    proj_b = 2 * OUT * S2P * 2   # bf16 per-image projections
    wid_b = 2 * OUT * C * 2      # bf16 identity weight
    bias_b = 2 * OUT * 4
    return x_b + ut_b + out_b + proj_b + wid_b + bias_b


def psp_module_forward(x, stage_ws, bottleneck_w, bottleneck_b):
    """x: (B, C, H, W) f32. stage_ws: list of 4 (C, C). bottleneck_w: (OUT, 5*C).
    bottleneck_b: (OUT,). Returns (B, OUT, H, W) f32."""
    B, C, H, W = x.shape
    HW = H * W
    OUT = bottleneck_w.shape[0]
    n_stage = len(SIZES)

    # ---- host-side: factored spatial operators --------------------------------
    pt_np, ut_np = _stage_operators(H, W)                         # (HW, S2), (S2, HW)

    # ---- host-side: pooling + folded stage projection (tiny, f32 exact) -------
    x_flat = x.reshape(B, C, HW)                                  # f32
    pooled = jnp.einsum('bcx,xs->bcs', x_flat, jnp.asarray(pt_np))  # (B, C, S2) f32
    projs, off = [], 0
    for k, s in enumerate(SIZES):
        s2 = s * s
        w_fold = bottleneck_w[:, k * C:(k + 1) * C] @ stage_ws[k]   # (OUT, C) f32
        projs.append(jnp.einsum('oc,bcs->bos', w_fold, pooled[:, :, off:off + s2]))
        off += s2
    proj = jnp.concatenate(projs, axis=-1)                        # (B, OUT, S2) f32
    proj = jnp.pad(proj, ((0, 0), (0, 0), (0, S2P - S2))).astype(jnp.bfloat16)

    # ---- host-side: pad the spatial axis to a multiple of 128 ------------------
    HW_pad = ((HW + 127) // 128) * 128
    pad_hw = HW_pad - HW

    ut_pad = np.zeros((S2P, HW_pad), dtype=np.float32)
    ut_pad[:S2, :HW] = ut_np
    ut = jnp.asarray(ut_pad).astype(jnp.bfloat16)                 # (S2P, HW_pad)

    x_k = jnp.pad(x_flat, ((0, 0), (0, 0), (0, pad_hw))).astype(jnp.bfloat16)  # (B, C, HW_pad)

    w_id = bottleneck_w[:, n_stage * C:(n_stage + 1) * C].astype(jnp.bfloat16)  # (OUT, C)
    bias2d = bottleneck_b.reshape(OUT, 1).astype(jnp.float32)

    # ---- lane-tile selection against an explicit VMEM budget -------------------
    VMEM_BUDGET = 40 * 1024 * 1024          # fits v7x's 64 MiB VMEM with headroom
    THW = 128
    for cand in (1024, 512, 256, 128):
        if HW_pad % cand == 0 and _tile_vmem_bytes(C, OUT, cand) <= VMEM_BUDGET:
            THW = cand
            break
    n_hw = HW_pad // THW

    in_specs = [
        pl.BlockSpec((None, C, THW), lambda b, j: (b, 0, j)),     # x, lane-tiled
        pl.BlockSpec((S2P, THW), lambda b, j: (0, j)),            # packed upsample op, lane-tiled
        pl.BlockSpec((None, OUT, S2P), lambda b, j: (b, 0, 0)),   # per-image projections
        pl.BlockSpec((OUT, C), lambda b, j: (0, 0)),              # identity-branch weight
        pl.BlockSpec((OUT, 1), lambda b, j: (0, 0)),              # bias
    ]
    out_specs = pl.BlockSpec((None, OUT, THW), lambda b, j: (b, 0, j))

    out = pl.pallas_call(
        _psp_kernel,
        out_shape=jax.ShapeDtypeStruct((B, OUT, HW_pad), jnp.float32),
        grid_spec=pltpu.PrefetchScalarGridSpec(
            num_scalar_prefetch=0,
            grid=(B, n_hw),
            in_specs=in_specs,
            out_specs=out_specs,
        ),
        compiler_params=pltpu.CompilerParams(
            # no cross-iteration carry -> both axes parallel (v7x megacore can
            # split the spatial axis even at batch=1; no effect on v5e/v6e)
            dimension_semantics=("parallel", "parallel"),
            vmem_limit_bytes=48 * 1024 * 1024,
        ),
    )(x_k, ut, proj, w_id, bias2d)

    return out[:, :, :HW].reshape(B, OUT, H, W)


# ------------------------------------------------------------- reference ----
def psp_reference(x, stage_ws, bottleneck_w, bottleneck_b):
    B, C, H, W = x.shape
    priors = []
    for k, s in enumerate(SIZES):
        Ah = jnp.asarray(_bilinear_upsample_matrix(s, H) @ _adaptive_avg_pool_matrix(H, s))
        Aw = jnp.asarray(_bilinear_upsample_matrix(s, W) @ _adaptive_avg_pool_matrix(W, s))
        y = jnp.einsum('hH,bcHW,wW->bchw', Ah, x, Aw)
        z = jnp.einsum('oc,bchw->bohw', stage_ws[k], y)
        priors.append(z)
    cat = jnp.concatenate(priors + [x], axis=1)
    out = jnp.einsum('oc,bchw->bohw', bottleneck_w, cat) + bottleneck_b[None, :, None, None]
    return jnp.maximum(out, 0.0)


# ------------------------------------------------------------------ main ----
if __name__ == "__main__":
    key = jax.random.PRNGKey(0)
    B, C, H, W = 2, 4, 16, 16
    OUT = 32  # out_features (small stand-in for 1024)

    k_x, k_sw, k_bw, k_bb = jax.random.split(key, 4)
    x = jax.random.normal(k_x, (B, C, H, W), dtype=jnp.float32)

    # parameter shapes from the module's __init__:
    #   4x stage conv weights (C, C, 1, 1) without bias -> (C, C)
    #   bottleneck conv weight (OUT, 5*C, 1, 1) -> (OUT, 5*C), bias (OUT,)
    sw_keys = jax.random.split(k_sw, len(SIZES))
    stage_ws = [0.3 * jax.random.normal(k, (C, C), dtype=jnp.float32) for k in sw_keys]
    bottleneck_w = 0.1 * jax.random.normal(k_bw, (OUT, C * (len(SIZES) + 1)), dtype=jnp.float32)
    bottleneck_b = 0.1 * jax.random.normal(k_bb, (OUT,), dtype=jnp.float32)

    out = psp_module_forward(x, stage_ws, bottleneck_w, bottleneck_b)
    out = jax.block_until_ready(out)

    ref = psp_reference(x, stage_ws, bottleneck_w, bottleneck_b)
    # bf16 in-kernel operands / f32 accumulation vs. pure-f32 reference -> loosened tolerance
    np.testing.assert_allclose(np.asarray(out), np.asarray(ref), rtol=2e-2, atol=2e-2)
    print("KERNEL_OK")
</pallas_src>

<mosaic_0001>
module attributes {stable_mosaic.version = 11 : i64} {
  func.func @_psp_kernel(%arg0: i32, %arg1: i32, %arg2: memref<1x4x256xbf16, #tpu.memory_space<vmem>>, %arg3: memref<64x256xbf16, #tpu.memory_space<vmem>>, %arg4: memref<1x32x64xbf16, #tpu.memory_space<vmem>>, %arg5: memref<32x4xbf16, #tpu.memory_space<vmem>>, %arg6: memref<32x1xf32, #tpu.memory_space<vmem>>, %arg7: memref<1x32x256xf32, #tpu.memory_space<vmem>>) attributes {dimension_semantics = [#tpu.dimension_semantics<parallel>, #tpu.dimension_semantics<parallel>], iteration_bounds = array<i64: 2, 1>, scalar_prefetch = 0 : i64, scratch_operands = 0 : i64, tpu.core_type = #tpu.core_type<tc>, window_params = [{transform_indices = @transform_0, window_bounds = array<i64: 1, 4, 256>}, {transform_indices = @transform_1, window_bounds = array<i64: 64, 256>}, {transform_indices = @transform_2, window_bounds = array<i64: 1, 32, 64>}, {pipeline_mode = #tpu.pipeline_mode<synchronous>, transform_indices = @transform_3, window_bounds = array<i64: 32, 4>}, {pipeline_mode = #tpu.pipeline_mode<synchronous>, transform_indices = @transform_4, window_bounds = array<i64: 32, 1>}, {transform_indices = @transform_5, window_bounds = array<i64: 1, 32, 256>}]} {
    %c0 = arith.constant 0 : index
    %c0_0 = arith.constant 0 : index
    %0 = vector.load %arg5[%c0, %c0_0] : memref<32x4xbf16, #tpu.memory_space<vmem>>, vector<32x4xbf16>
    %c0_1 = arith.constant 0 : index
    %c0_2 = arith.constant 0 : index
    %c0_3 = arith.constant 0 : index
    %1 = vector.load %arg2[%c0_1, %c0_2, %c0_3] : memref<1x4x256xbf16, #tpu.memory_space<vmem>>, vector<1x4x256xbf16>
    %2 = vector.shape_cast %1 : vector<1x4x256xbf16> to vector<4x256xbf16>
    %cst = arith.constant dense<0.000000e+00> : vector<32x256xf32>
    %3 = tpu.matmul %0, %2, %cst {dimension_numbers = #tpu.dot_dimension_numbers<[1], [0], [0], [1], [0, 0, 1, 1], [], []>} : vector<32x4xbf16>, vector<4x256xbf16>, vector<32x256xf32> -> vector<32x256xf32>
    %c0_4 = arith.constant 0 : index
    %c0_5 = arith.constant 0 : index
    %c0_6 = arith.constant 0 : index
    %4 = vector.load %arg4[%c0_4, %c0_5, %c0_6] : memref<1x32x64xbf16, #tpu.memory_space<vmem>>, vector<1x32x64xbf16>
    %5 = vector.shape_cast %4 : vector<1x32x64xbf16> to vector<32x64xbf16>
    %c0_7 = arith.constant 0 : index
    %c0_8 = arith.constant 0 : index
    %6 = vector.load %arg3[%c0_7, %c0_8] : memref<64x256xbf16, #tpu.memory_space<vmem>>, vector<64x256xbf16>
    %cst_9 = arith.constant dense<0.000000e+00> : vector<32x256xf32>
    %7 = tpu.matmul %5, %6, %cst_9 {dimension_numbers = #tpu.dot_dimension_numbers<[1], [0], [0], [1], [0, 0, 1, 1], [], []>} : vector<32x64xbf16>, vector<64x256xbf16>, vector<32x256xf32> -> vector<32x256xf32>
    %8 = arith.addf %3, %7 : vector<32x256xf32>
    %c0_10 = arith.constant 0 : index
    %c0_11 = arith.constant 0 : index
    %9 = vector.load %arg6[%c0_10, %c0_11] : memref<32x1xf32, #tpu.memory_space<vmem>>, vector<32x1xf32>
    %10 = vector.broadcast %9 : vector<32x1xf32> to vector<32x256xf32>
    %11 = arith.addf %8, %10 : vector<32x256xf32>
    %cst_12 = arith.constant 0.000000e+00 : f32
    %12 = vector.broadcast %cst_12 : f32 to vector<32x256xf32>
    %13 = arith.maximumf %11, %12 : vector<32x256xf32>
    %c0_13 = arith.constant 0 : index
    %c0_14 = arith.constant 0 : index
    %c0_15 = arith.constant 0 : index
    %14 = vector.load %arg7[%c0_13, %c0_14, %c0_15] : memref<1x32x256xf32, #tpu.memory_space<vmem>>, vector<1x32x256xf32>
    %15 = vector.shape_cast %14 : vector<1x32x256xf32> to vector<32x256xf32>
    %16 = vector.shape_cast %13 : vector<32x256xf32> to vector<1x32x256xf32>
    tpu.vector_store %arg7[%c0_13, %c0_14, %c0_15], %16 {strides = array<i32>} : memref<1x32x256xf32, #tpu.memory_space<vmem>>, vector<1x32x256xf32>,
    return
  }
  func.func @transform_0(%arg0: i32, %arg1: i32) -> (i32, i32, i32) {
    %c0_i32 = arith.constant 0 : i32
    %c0_i32_0 = arith.constant 0 : i32
    return %arg0, %c0_i32, %arg1 : i32, i32, i32
  }
  func.func @transform_1(%arg0: i32, %arg1: i32) -> (i32, i32) {
    %c0_i32 = arith.constant 0 : i32
    %c0_i32_0 = arith.constant 0 : i32
    return %c0_i32, %arg1 : i32, i32
  }
  func.func @transform_2(%arg0: i32, %arg1: i32) -> (i32, i32, i32) {
    %c0_i32 = arith.constant 0 : i32
    %c0_i32_0 = arith.constant 0 : i32
    %c0_i32_1 = arith.constant 0 : i32
    return %arg0, %c0_i32, %c0_i32_0 : i32, i32, i32
  }
  func.func @transform_3(%arg0: i32, %arg1: i32) -> (i32, i32) {
    %c0_i32 = arith.constant 0 : i32
    %c0_i32_0 = arith.constant 0 : i32
    %c0_i32_1 = arith.constant 0 : i32
    return %c0_i32, %c0_i32_0 : i32, i32
  }
  func.func @transform_4(%arg0: i32, %arg1: i32) -> (i32, i32) {
    %c0_i32 = arith.constant 0 : i32
    %c0_i32_0 = arith.constant 0 : i32
    %c0_i32_1 = arith.constant 0 : i32
    return %c0_i32, %c0_i32_0 : i32, i32
  }
  func.func @transform_5(%arg0: i32, %arg1: i32) -> (i32, i32, i32) {
    %c0_i32 = arith.constant 0 : i32
    %c0_i32_0 = arith.constant 0 : i32
    return %arg0, %c0_i32, %arg1 : i32, i32, i32
  }
}

</mosaic_0001>

<llo_original>
// kernel: tpu_custom_call.1
$region0: #{tpu_custom_call.1}
  #allocation0 [shape = 'u32[]', space=smem, size = 0x4, offset = 0x4, fixed_abs, tag = 'smem constant byte address 0x4 - core index']
  #allocation1 [shape = 'u32[72,128]{1,0:T(1,128)}', space=vmem, size = 0x9000, scoped, tag = 'internal scratch']
  %s0 = inlined_call_operand.vmem [shape: bf16[2,4,256], index: 0, kind: input, shape index: {}]
  %s1 = inlined_call_operand.hbm [shape: bf16[64,256], index: 1, kind: input, shape index: {}]
  %s2 = inlined_call_operand.vmem [shape: bf16[2,32,64], index: 2, kind: input, shape index: {}]
  %s3 = inlined_call_operand.vmem [shape: bf16[32,4], index: 3, kind: input, shape index: {}]
  %s4 = inlined_call_operand.vmem [shape: f32[32,1], index: 4, kind: input, shape index: {}]
  %s5 = inlined_call_operand.hbm [shape: f32[2,32,256], index: 5, kind: output, shape index: {}]
  %s6 = sld [smem:[#allocation0]]
  $region57: #{tpu_custom_call.1} parent=0
    _
  %s8 = ssub.s32 1, %s6
  %s9 = scalar_select 0, %s8, %s6
  $region1: #{tpu_custom_call.1} parent=0
    #allocation2 [shape = 'u8[32768]{0}', space=vmem, size = 0x8000, scoped, tag = 'input window, operand 1, single buffered']
    #allocation3 [shape = 's32[2]{0}', space=sflag, size = 0x8, scoped, tag = 'scoped memory for tpu_custom_call.1']
    #allocation4 [shape = 's32[2]{0}', space=sflag, size = 0x8, scoped, tag = 'scoped memory for tpu_custom_call.1']
    #allocation5 [shape = 'u8[65536]{0}', space=vmem, size = 0x10000, scoped, tag = 'output window, operand 0']
    %10 = vsyncpa [#allocation3], 0
    %11 = vsyncpa [#allocation4], 0
    %s12 = scalar_lea.sflag [#allocation4], 1
    %13 = vsyncpa %s12, 0
    loop: start=0, step=1, limit=4
    $region2: #{tpu_custom_call.1} parent=1 // loop_pre_header
      _
    $region3: #{tpu_custom_call.1} parent=1 // loop_header
      %s15 = sphi 0, %s19
      %p16 = scmp.ge.s32.totalorder %s15, 4
      %s22 = sphi 0, %s34
      %s23 = sphi 0, %s30
      %s24 = sphi 0, %s22
      %s25 = sphi 0, %s23
      %s26 = sphi 0, %s24
      %s27 = sphi 0, %s25
      %s39 = sphi 0, %s41
      %s42 = sphi 0, %s39
      %s43 = sphi 0, %s42
      %s59 = sphi 0, %s43
      %s65 = sphi 0, %s67
      %s68 = sphi 0, %s65
      %s69 = sphi 0, %s68
      %s85 = sphi 0, %s69
      %s91 = sphi 0, %s93
      %s94 = sphi 0, %s91
      %s95 = sphi 0, %s94
      %s111 = sphi 0, %s95
      %s115 = sphi 0, %s115
      %s117 = sphi 0, %s115
      %s118 = sphi 0, %s117
      %s132 = sphi 0, %s118
      %s136 = sphi 0, %s136
      %s138 = sphi 0, %s136
      %s139 = sphi 0, %s138
      %s153 = sphi 0, %s139
      %s161 = sphi 0, %s163
      %s164 = sphi 0, %s161
      %s165 = sphi 0, %s164
      %s181 = sphi 0, %s165
    $region4: #{tpu_custom_call.1} parent=1 // loop_header_branch
      %18 = sbr.rel (%p16) target = $region8
    $region5: #{tpu_custom_call.1} parent=1 // loop_body
      %s20 = ssub.s32 %s15, 1
      %s21 = ssub.s32 %s15, 2
      %s28 = sadd.s32 1, %s23
      %p29 = scmp.ge.s32.totalorder %s28, 1
      %s30 = scalar_select %p29, 0, %s28
      %s31 = sadd.s32 1, %s22
      %s32 = scalar_select %p29, %s31, %s22
      %p33 = scmp.ge.s32.totalorder %s32, 2
      %s34 = scalar_select %p33, 0, %s32
      %s35 = ssub.s32 %s22, %s34
      %s36 = ssub.s32 %s23, %s30
      %s37 = sor.u32 %s35, %s36
      %p38 = scmp.eq.s32.totalorder %s37, 0
      %s40 = sadd.s32 %s39, 1
      %s41 = scalar_select %p38, %s39, %s40
      %p44 = pneg %p38
      %p45 = scmp.eq.s32.totalorder %s15, 1
      %p46 = por %p44, %p45
      %p47 = scmp.ne.s32.totalorder %s39, %s42
      %p48 = scmp.eq.s32.totalorder %s15, 0
      %p49 = por %p47, %p48
      %p50 = scmp.ne.s32.totalorder %s39, %s42
      %p51 = scmp.eq.s32.totalorder %s20, 1
      %p52 = por %p50, %p51
      %p53 = scmp.ne.s32.totalorder %s42, %s43
      %p54 = scmp.eq.s32.totalorder %s20, 0
      %p55 = por %p53, %p54
      %p56 = scmp.ne.s32.totalorder %s42, %s43
      %p57 = scmp.eq.s32.totalorder %s21, 1
      %p58 = por %p56, %p57
      %p60 = scmp.ne.s32.totalorder %s43, %s59
      %p61 = scmp.eq.s32.totalorder %s21, 0
      %p62 = por %p60, %p61
      %s63 = ssub.s32 %s23, %s30
      %p64 = scmp.eq.s32.totalorder %s63, 0
      %s66 = sadd.s32 %s65, 1
      %s67 = scalar_select %p64, %s65, %s66
      %p70 = pneg %p64
      %p71 = scmp.eq.s32.totalorder %s15, 1
      %p72 = por %p70, %p71
      %p73 = scmp.ne.s32.totalorder %s65, %s68
      %p74 = scmp.eq.s32.totalorder %s15, 0
      %p75 = por %p73, %p74
      %p76 = scmp.ne.s32.totalorder %s65, %s68
      %p77 = scmp.eq.s32.totalorder %s20, 1
      %p78 = por %p76, %p77
      %p79 = scmp.ne.s32.totalorder %s68, %s69
      %p80 = scmp.eq.s32.totalorder %s20, 0
      %p81 = por %p79, %p80
      %p82 = scmp.ne.s32.totalorder %s68, %s69
      %p83 = scmp.eq.s32.totalorder %s21, 1
      %p84 = por %p82, %p83
      %p86 = scmp.ne.s32.totalorder %s69, %s85
      %p87 = scmp.eq.s32.totalorder %s21, 0
      %p88 = por %p86, %p87
      %s89 = ssub.s32 %s22, %s34
      %p90 = scmp.eq.s32.totalorder %s89, 0
      %s92 = sadd.s32 %s91, 1
      %s93 = scalar_select %p90, %s91, %s92
      %p96 = pneg %p90
      %p97 = scmp.eq.s32.totalorder %s15, 1
      %p98 = por %p96, %p97
      %p99 = scmp.ne.s32.totalorder %s91, %s94
      %p100 = scmp.eq.s32.totalorder %s15, 0
      %p101 = por %p99, %p100
      %p102 = scmp.ne.s32.totalorder %s91, %s94
      %p103 = scmp.eq.s32.totalorder %s20, 1
      %p104 = por %p102, %p103
      %p105 = scmp.ne.s32.totalorder %s94, %s95
      %p106 = scmp.eq.s32.totalorder %s20, 0
      %p107 = por %p105, %p106
      %p108 = scmp.ne.s32.totalorder %s94, %s95
      %p109 = scmp.eq.s32.totalorder %s21, 1
      %p110 = por %p108, %p109
      %p112 = scmp.ne.s32.totalorder %s95, %s111
      %p113 = scmp.eq.s32.totalorder %s21, 0
      %p114 = por %p112, %p113
      %s116 = sadd.s32 %s115, 1
      %p119 = scmp.eq.s32.totalorder %s15, 1
      %p120 = scmp.ne.s32.totalorder %s115, %s117
      %p121 = scmp.eq.s32.totalorder %s15, 0
      %p122 = por %p120, %p121
      %p123 = scmp.ne.s32.totalorder %s115, %s117
      %p124 = scmp.eq.s32.totalorder %s20, 1
      %p125 = por %p123, %p124
      %p126 = scmp.ne.s32.totalorder %s117, %s118
      %p127 = scmp.eq.s32.totalorder %s20, 0
      %p128 = por %p126, %p127
      %p129 = scmp.ne.s32.totalorder %s117, %s118
      %p130 = scmp.eq.s32.totalorder %s21, 1
      %p131 = por %p129, %p130
      %p133 = scmp.ne.s32.totalorder %s118, %s132
      %p134 = scmp.eq.s32.totalorder %s21, 0
      %p135 = por %p133, %p134
      %s137 = sadd.s32 %s136, 1
      %p140 = scmp.eq.s32.totalorder %s15, 1
      %p141 = scmp.ne.s32.totalorder %s136, %s138
      %p142 = scmp.eq.s32.totalorder %s15, 0
      %p143 = por %p141, %p142
      %p144 = scmp.ne.s32.totalorder %s136, %s138
      %p145 = scmp.eq.s32.totalorder %s20, 1
      %p146 = por %p144, %p145
      %p147 = scmp.ne.s32.totalorder %s138, %s139
      %p148 = scmp.eq.s32.totalorder %s20, 0
      %p149 = por %p147, %p148
      %p150 = scmp.ne.s32.totalorder %s138, %s139
      %p151 = scmp.eq.s32.totalorder %s21, 1
      %p152 = por %p150, %p151
      %p154 = scmp.ne.s32.totalorder %s139, %s153
      %p155 = scmp.eq.s32.totalorder %s21, 0
      %p156 = por %p154, %p155
      %s157 = ssub.s32 %s22, %s34
      %s158 = ssub.s32 %s23, %s30
      %s159 = sor.u32 %s157, %s158
      %p160 = scmp.eq.s32.totalorder %s159, 0
      %s162 = sadd.s32 %s161, 1
      %s163 = scalar_select %p160, %s161, %s162
      %p166 = pneg %p160
      %p167 = scmp.eq.s32.totalorder %s15, 1
      %p168 = por %p166, %p167
      %p169 = scmp.ne.s32.totalorder %s161, %s164
      %p170 = scmp.eq.s32.totalorder %s15, 0
      %p171 = por %p169, %p170
      %p172 = scmp.ne.s32.totalorder %s161, %s164
      %p173 = scmp.eq.s32.totalorder %s20, 1
      %p174 = por %p172, %p173
      %p175 = scmp.ne.s32.totalorder %s164, %s165
      %p176 = scmp.eq.s32.totalorder %s20, 0
      %p177 = por %p175, %p176
      %p178 = scmp.ne.s32.totalorder %s164, %s165
      %p179 = scmp.eq.s32.totalorder %s21, 1
      %p180 = por %p178, %p179
      %p182 = scmp.ne.s32.totalorder %s165, %s181
      %p183 = scmp.eq.s32.totalorder %s21, 0
      %p184 = por %p182, %p183
      %p185 = scmp.le.s32.totalorder 1, %s15
      %p186 = scmp.lt.s32.totalorder %s15, 3
      %p187 = pnand %p185, %p186
      %p188 = pneg %p187
      // Predicated region
      $region9: #{tpu_custom_call.1} parent=5 // pred_check
        _
      $region10: #{tpu_custom_call.1} parent=5 // pred_check_branch
        %190 = sbr.rel (%p187) target = $region12
      $region11: #{tpu_custom_call.1} parent=5 // pred_region
        %s191 = ssub.s32 %s15, 1
        // Predicated region
        $region13: #{tpu_custom_call.1} parent=11 // pred_check
          %p192 = pneg %p81
        $region14: #{tpu_custom_call.1} parent=11 // pred_check_branch
          %194 = sbr.rel (%p192) target = $region16
        $region15: #{tpu_custom_call.1} parent=11 // pred_region
          %s195 = smul.u32 2, %s25
          %197 = vsyncadd [#allocation3], 0
          %s198 = smul.addr %s195, 4
          %s199 = scalar_lea.hbm %s1, %s198
          %s200 = sshll.u32 %s199, 4
          %s201 = int_to_ptr.hbm [resolvable:$true] %s200
          %s202 = sshll.u32 [#allocation2], 4
          %s203 = int_to_ptr.vmem [resolvable:$true] %s202
          %208 = dma.hbm_to_vmem [thread:$0]  %s201, 1024, %s203, [#allocation3], 128, 128, 8
        $region16: #{tpu_custom_call.1} parent=11 // pred_fallthru
          _
        // Predicated region
        $region17: #{tpu_custom_call.1} parent=11 // pred_check
          %p209 = pneg %p128
        $region18: #{tpu_custom_call.1} parent=11 // pred_check_branch
          %211 = sbr.rel (%p209) target = $region20
        $region19: #{tpu_custom_call.1} parent=11 // pred_region
          _
        $region20: #{tpu_custom_call.1} parent=11 // pred_fallthru
          _
        // Predicated region
        $region21: #{tpu_custom_call.1} parent=11 // pred_check
          %p212 = pneg %p149
        $region22: #{tpu_custom_call.1} parent=11 // pred_check_branch
          %214 = sbr.rel (%p212) target = $region24
        $region23: #{tpu_custom_call.1} parent=11 // pred_region
          _
        $region24: #{tpu_custom_call.1} parent=11 // pred_fallthru
          _
      $region12: #{tpu_custom_call.1} parent=5 // pred_fallthru
        _
      %p215 = scmp.lt.s32.totalorder %s15, 2
      // Predicated region
      $region25: #{tpu_custom_call.1} parent=5 // pred_check
        %p216 = pneg %p215
      $region26: #{tpu_custom_call.1} parent=5 // pred_check_branch
        %218 = sbr.rel (%p216) target = $region28
      $region27: #{tpu_custom_call.1} parent=5 // pred_region
        // Predicated region
        $region29: #{tpu_custom_call.1} parent=27 // pred_check
          %p219 = pneg %p49
        $region30: #{tpu_custom_call.1} parent=27 // pred_check_branch
          %221 = sbr.rel (%p219) target = $region32
        $region31: #{tpu_custom_call.1} parent=27 // pred_region
          %s222 = smul.u32 2, %s23
          %p223 = scmp.lt.s32.totalorder %s22, 1
          %s224 = scalar_select %p223, %s22, 1
          %p225 = scmp.lt.s32.totalorder %s222, 1
          %s226 = scalar_select %p225, %s222, 1
          %s227 = smul.addr %s224, 2
          %s228 = sadd.s32 %s226, %s227
          %s229 = smul.addr %s228, 2
          %s230 = scalar_lea.vmem %s0, %s229
          %s231 = smul.u32 2, %s23
        $region32: #{tpu_custom_call.1} parent=27 // pred_fallthru
          _
        // Predicated region
        $region33: #{tpu_custom_call.1} parent=27 // pred_check
          %p232 = pneg %p101
        $region34: #{tpu_custom_call.1} parent=27 // pred_check_branch
          %234 = sbr.rel (%p232) target = $region36
        $region35: #{tpu_custom_call.1} parent=27 // pred_region
          %p235 = scmp.lt.s32.totalorder %s22, 1
          %s236 = scalar_select %p235, %s22, 1
          %s237 = smul.addr %s236, 4
          %s238 = smul.addr %s237, 4
          %s239 = scalar_lea.vmem %s2, %s238
        $region36: #{tpu_custom_call.1} parent=27 // pred_fallthru
          _
      $region28: #{tpu_custom_call.1} parent=5 // pred_fallthru
        _
      %p240 = scmp.le.s32.totalorder 1, %s15
      %p241 = scmp.lt.s32.totalorder %s15, 3
      %p242 = pnand %p240, %p241
      %p243 = pneg %p242
      // Predicated region
      $region37: #{tpu_custom_call.1} parent=5 // pred_check
        _
      $region38: #{tpu_custom_call.1} parent=5 // pred_check_branch
        %245 = sbr.rel (%p242) target = $region40
      $region39: #{tpu_custom_call.1} parent=5 // pred_region
        %s246 = ssub.s32 %s15, 1
        // Predicated region
        $region41: #{tpu_custom_call.1} parent=39 // pred_check
          %p247 = pneg %p81
        $region42: #{tpu_custom_call.1} parent=39 // pred_check_branch
          %249 = sbr.rel (%p247) target = $region44
        $region43: #{tpu_custom_call.1} parent=39 // pred_region
          %251 = dma.done [#allocation3], 1024
        $region44: #{tpu_custom_call.1} parent=39 // pred_fallthru
          _
        %s252 = smul.u32 2, %s25
        %p253 = scmp.lt.s32.totalorder %s24, 1
        %s254 = scalar_select %p253, %s24, 1
        %p255 = scmp.lt.s32.totalorder %s252, 1
        %s256 = scalar_select %p255, %s252, 1
        %s257 = smul.addr %s254, 2
        %s258 = sadd.s32 %s256, %s257
        %s259 = smul.addr %s258, 2
        %s260 = scalar_lea.vmem %s0, %s259
        %p261 = pneg %p55
        %p262 = pneg %p52
        %p263 = pneg %p81
        %p264 = pneg %p78
        %p265 = scmp.lt.s32.totalorder %s24, 1
        %s266 = scalar_select %p265, %s24, 1
        %s267 = smul.addr %s266, 4
        %s268 = smul.addr %s267, 4
        %s269 = scalar_lea.vmem %s2, %s268
        %p270 = pneg %p107
        %p271 = pneg %p104
        %p272 = pneg %p128
        %p273 = pneg %p125
        %p274 = pneg %p149
        %p275 = pneg %p146
        %p276 = pneg %p177
        %p277 = pneg %p174
        %s278 = sand.u32 %s164, 1
        %s279 = scalar_lea.sflag [#allocation4], %s278
        %s280 = sand.u32 %s164, 1
        %s281 = smul.addr %s280, 64
        %s282 = scalar_lea.vmem [#allocation5], %s281
        %s283 = smul.u32 2, %s25
        %p284 = scmp.lt.s32.totalorder %s24, 1
        %s285 = scalar_select %p284, %s24, 1
        %p286 = scmp.lt.s32.totalorder %s283, 1
        %s287 = scalar_select %p286, %s283, 1
        %s288 = smul.addr %s285, 2
        %s289 = sadd.s32 %s287, %s288
        %s290 = smul.addr %s289, 2
        %s291 = scalar_lea.vmem %s0, %s290
        %s292 = smul.u32 2, %s25
        %s293 = smul.u32 2, %s25
        %p294 = scmp.lt.s32.totalorder %s24, 1
        %s295 = scalar_select %p294, %s24, 1
        %s296 = smul.addr %s295, 4
        %s297 = smul.addr %s296, 4
        %s298 = scalar_lea.vmem %s2, %s297
        %s299 = smul.u32 2, %s25
        %v301 = vld [vmem:[%s3] sm:$0xf]
        %v302 = vld [vmem:[%s3 + $0x4] sm:$0xf]
        %v303 = vld [vmem:[%s3 + $0x8] sm:$0xf]
        %v304 = vld [vmem:[%s3 + $0xc] sm:$0xf]
        %v305 = vld [vmem:[%s291] sm:$0xf]
        %v306 = vld [vmem:[%s298] sm:$0xf]
        %v307 = vld [vmem:[%s298 + $0x4] sm:$0xf]
        %v308 = vld [vmem:[%s298 + $0x8] sm:$0xf]
        %v309 = vld [vmem:[%s298 + $0xc] sm:$0xf]
        %v310 = vld [vmem:[#allocation2] sm:$0xff]
        %v311 = vld [vmem:[#allocation2 + $0x8] sm:$0xff]
        %v312 = vld [vmem:[#allocation2 + $0x10] sm:$0xff]
        %v313 = vld [vmem:[#allocation2 + $0x18] sm:$0xff]
        %v314 = vld [vmem:[#allocation2 + $0x20] sm:$0xff]
        %v315 = vld [vmem:[#allocation2 + $0x28] sm:$0xff]
        %v316 = vld [vmem:[#allocation2 + $0x30] sm:$0xff]
        %v317 = vld [vmem:[#allocation2 + $0x38] sm:$0xff]
        %v322 = vunpack.c.l.b16 %v306
        %v323 = vunpack.c.l.b16 %v307
        %v324 = vunpack.c.l.b16 %v308
        %v325 = vunpack.c.l.b16 %v309
        %v326 = vpack.c.b16 %v323, %v322
        %v327 = vpack.c.b16 %v325, %v324
        %v336 = vunpack.c.l.b16 %v310
        %v337 = vunpack.c.h.b16 %v310
        %v338 = vunpack.c.l.b16 %v311
        %v339 = vunpack.c.h.b16 %v311
        %v340 = vunpack.c.l.b16 %v312
        %v341 = vunpack.c.h.b16 %v312
        %v342 = vunpack.c.l.b16 %v313
        %v343 = vunpack.c.h.b16 %v313
        %v344 = vunpack.c.l.b16 %v314
        %v345 = vunpack.c.h.b16 %v314
        %v346 = vunpack.c.l.b16 %v315
        %v347 = vunpack.c.h.b16 %v315
        %v348 = vunpack.c.l.b16 %v316
        %v349 = vunpack.c.h.b16 %v316
        %v350 = vunpack.c.l.b16 %v317
        %v351 = vunpack.c.h.b16 %v317
        %v352 = vpack.c.b16 %v338, %v336
        %v353 = vpack.c.b16 %v339, %v337
        %v354 = vpack.c.b16 %v342, %v340
        %v355 = vpack.c.b16 %v343, %v341
        %v356 = vpack.c.b16 %v346, %v344
        %v357 = vpack.c.b16 %v347, %v345
        %v358 = vpack.c.b16 %v350, %v348
        %v359 = vpack.c.b16 %v351, %v349
        %vm368 = vcmask 523264
        %v370 = vsel %vm368, %v326, 0
        %v373 = vsel %vm368, %v327, 0
        %375 = vmatpush.bf16.msra.mxu0 0
        %376 = vmatpush.bf16.msra.mxu0 0
        %377 = vmatpush.bf16.msra.mxu0 0
        %378 = vmatpush.bf16.msra.mxu0 0
        %379 = vmatpush.bf16.msra.mxu0 %v358
        %380 = vmatpush.bf16.msra.mxu0 %v356
        %381 = vmatpush.bf16.msra.mxu0 %v354
        %382 = vmatpush.bf16.msra.mxu0 %v352
        %383 = vmatmul.bf16.gmra.mxu0 %v370
        %v384 = vpop.f32.mrf.mxu0
        %v385 = vadd.f32 0.0, %v384
        %v386 = vpop.f32.mrf.mxu0
        %v387 = vadd.f32 0.0, %v386
        %388 = vmatmul.bf16.gmra.mxu0 %v373
        %v389 = vpop.f32.mrf.mxu0
        %v390 = vadd.f32 0.0, %v389
        %v391 = vpop.f32.mrf.mxu0
        %v392 = vadd.f32 0.0, %v391
        %393 = vdwg.mxu0
        %394 = vmatpush.bf16.msra.mxu0 0
        %395 = vmatpush.bf16.msra.mxu0 0
        %396 = vmatpush.bf16.msra.mxu0 0
        %397 = vmatpush.bf16.msra.mxu0 0
        %398 = vmatpush.bf16.msra.mxu0 %v359
        %399 = vmatpush.bf16.msra.mxu0 %v357
        %400 = vmatpush.bf16.msra.mxu0 %v355
        %401 = vmatpush.bf16.msra.mxu0 %v353
        %402 = vmatmul.bf16.gmra.mxu0 %v370
        %v403 = vpop.f32.mrf.mxu0
        %v404 = vadd.f32 0.0, %v403
        %v405 = vpop.f32.mrf.mxu0
        %v406 = vadd.f32 0.0, %v405
        %407 = vmatmul.bf16.gmra.mxu0 %v373
        %v408 = vpop.f32.mrf.mxu0
        %v409 = vadd.f32 0.0, %v408
        %v410 = vpop.f32.mrf.mxu0
        %v411 = vadd.f32 0.0, %v410
        %412 = vdwg.mxu0
        %v417 = vunpack.c.l.b16 %v301
        %v418 = vunpack.c.l.b16 %v302
        %v419 = vunpack.c.l.b16 %v303
        %v420 = vunpack.c.l.b16 %v304
        %v421 = vpack.c.b16 %v418, %v417
        %v422 = vpack.c.b16 %v420, %v419
        %424 = vst [vmem:[#allocation1] ss:$4 sm:$0xff] %v305
        %v425 = vld.sshfl [vmem:[#allocation1] sm:$0xff pattern:$0x73625140]
        %v426 = vld.sshfl [vmem:[#allocation1 + $0x8] sm:$0xff pattern:$0x73625140]
        %vm427 = vcmask 31744
        %v429 = vsel %vm427, %v421, 0
        %v432 = vsel %vm427, %v422, 0
        %vm434 = vcmask 1041408
        %v435 = vsel %vm434, %v425, 0
        %v437 = vsel %vm434, %v426, 0
        %439 = vmatpush.bf16.msra.mxu0 0
        %440 = vmatpush.bf16.msra.mxu0 0
        %441 = vmatpush.bf16.msra.mxu0 0
        %442 = vmatpush.bf16.msra.mxu0 0
        %443 = vmatpush.bf16.msra.mxu0 0
        %444 = vmatpush.bf16.msra.mxu0 0
        %445 = vmatpush.bf16.msra.mxu0 0
        %446 = vmatpush.bf16.msra.mxu0 %v435
        %447 = vmatmul.bf16.gmra.mxu0 %v429
        %v448 = vpop.f32.mrf.mxu0
        %v449 = vadd.f32 %v385, %v448
        %v450 = vpop.f32.mrf.mxu0
        %v451 = vadd.f32 %v387, %v450
        %452 = vmatmul.bf16.gmra.mxu0 %v432
        %v453 = vpop.f32.mrf.mxu0
        %v454 = vadd.f32 %v390, %v453
        %v455 = vpop.f32.mrf.mxu0
        %v456 = vadd.f32 %v392, %v455
        %457 = vdwg.mxu0
        %458 = vmatpush.bf16.msra.mxu0 0
        %459 = vmatpush.bf16.msra.mxu0 0
        %460 = vmatpush.bf16.msra.mxu0 0
        %461 = vmatpush.bf16.msra.mxu0 0
        %462 = vmatpush.bf16.msra.mxu0 0
        %463 = vmatpush.bf16.msra.mxu0 0
        %464 = vmatpush.bf16.msra.mxu0 0
        %465 = vmatpush.bf16.msra.mxu0 %v437
        %466 = vmatmul.bf16.gmra.mxu0 %v429
        %v467 = vpop.f32.mrf.mxu0
        %v468 = vadd.f32 %v404, %v467
        %v469 = vpop.f32.mrf.mxu0
        %v470 = vadd.f32 %v406, %v469
        %471 = vmatmul.bf16.gmra.mxu0 %v432
        %v472 = vpop.f32.mrf.mxu0
        %v473 = vadd.f32 %v409, %v472
        %v474 = vpop.f32.mrf.mxu0
        %v475 = vadd.f32 %v411, %v474
        %476 = vdwg.mxu0
        %v477 = vld [vmem:[%s4] sm:$0xff]
        %v478 = vld [vmem:[%s4 + $0x8] sm:$0xff]
        %v479 = vld [vmem:[%s4 + $0x10] sm:$0xff]
        %v480 = vld [vmem:[%s4 + $0x18] sm:$0xff]
        %482 = vset.pattern.permute.xlu0 0
        %483 = vperm.xlu0 %482, %v477
        %v484 = vpop.permute.xlu0 %483
        %487 = vset.pattern.permute.xlu0 0
        %488 = vperm.xlu0 %487, %v478
        %v489 = vpop.permute.xlu0 %488
        %492 = vset.pattern.permute.xlu0 0
        %493 = vperm.xlu0 %492, %v479
        %v494 = vpop.permute.xlu0 %493
        %497 = vset.pattern.permute.xlu0 0
        %498 = vperm.xlu0 %497, %v480
        %v499 = vpop.permute.xlu0 %498
        %v501 = vadd.f32 %v449, %v484
        %v502 = vadd.f32 %v468, %v484
        %v503 = vadd.f32 %v451, %v489
        %v504 = vadd.f32 %v470, %v489
        %v505 = vadd.f32 %v454, %v494
        %v506 = vadd.f32 %v473, %v494
        %v507 = vadd.f32 %v456, %v499
        %v508 = vadd.f32 %v475, %v499
        %v509 = vmax.f32 %v501, 0.0
        %v510 = vmax.f32 %v502, 0.0
        %v511 = vmax.f32 %v503, 0.0
        %v512 = vmax.f32 %v504, 0.0
        %v513 = vmax.f32 %v505, 0.0
        %v514 = vmax.f32 %v506, 0.0
        %v515 = vmax.f32 %v507, 0.0
        %v516 = vmax.f32 %v508, 0.0
        %517 = vst [vmem:[%s282] sm:$0xff] %v509
        %518 = vst [vmem:[%s282 + $0x8] sm:$0xff] %v510
        %519 = vst [vmem:[%s282 + $0x10] sm:$0xff] %v511
        %520 = vst [vmem:[%s282 + $0x18] sm:$0xff] %v512
        %521 = vst [vmem:[%s282 + $0x20] sm:$0xff] %v513
        %522 = vst [vmem:[%s282 + $0x28] sm:$0xff] %v514
        %523 = vst [vmem:[%s282 + $0x30] sm:$0xff] %v515
        %524 = vst [vmem:[%s282 + $0x38] sm:$0xff] %v516
        %s525 = sand.u32 %s164, 1
        %s526 = scalar_lea.sflag [#allocation4], %s525
        %s527 = sand.u32 %s164, 1
        %s528 = smul.addr %s527, 64
        %s529 = scalar_lea.vmem [#allocation5], %s528
        // Predicated region
        $region45: #{tpu_custom_call.1} parent=39 // pred_check
          %p530 = pneg %p174
        $region46: #{tpu_custom_call.1} parent=39 // pred_check_branch
          %532 = sbr.rel (%p530) target = $region48
        $region47: #{tpu_custom_call.1} parent=39 // pred_region
          %s533 = smul.u32 2, %s25
          %535 = vsyncadd %s526, 0
          %s536 = smul.addr %s24, 8
          %s537 = sadd.s32 %s533, %s536
          %s538 = smul.addr %s537, 8
          %s539 = scalar_lea.hbm %s5, %s538
          %s540 = sshll.u32 %s529, 4
          %s541 = int_to_ptr.vmem [resolvable:$true] %s540
          %s542 = sshll.u32 %s539, 4
          %s543 = int_to_ptr.hbm [resolvable:$true] %s542
          %548 = dma.vmem_to_hbm [thread:$0]  %s541, 1024, %s543, %s526, 256, 256, 16
        $region48: #{tpu_custom_call.1} parent=39 // pred_fallthru
          _
      $region40: #{tpu_custom_call.1} parent=5 // pred_fallthru
        _
      %p549 = scmp.le.s32.totalorder 2, %s15
      // Predicated region
      $region49: #{tpu_custom_call.1} parent=5 // pred_check
        %p550 = pneg %p549
      $region50: #{tpu_custom_call.1} parent=5 // pred_check_branch
        %552 = sbr.rel (%p550) target = $region52
      $region51: #{tpu_custom_call.1} parent=5 // pred_region
        %s553 = ssub.s32 %s15, 2
        // Predicated region
        $region53: #{tpu_custom_call.1} parent=51 // pred_check
          %p554 = pneg %p180
        $region54: #{tpu_custom_call.1} parent=51 // pred_check_branch
          %556 = sbr.rel (%p554) target = $region56
        $region55: #{tpu_custom_call.1} parent=51 // pred_region
          %s557 = sand.u32 %s165, 1
          %s558 = scalar_lea.sflag [#allocation4], %s557
          %s559 = sand.u32 %s165, 1
          %s560 = smul.addr %s559, 64
          %s561 = scalar_lea.vmem [#allocation5], %s560
          %563 = dma.done %s558, 1024
        $region56: #{tpu_custom_call.1} parent=51 // pred_fallthru
          _
      $region52: #{tpu_custom_call.1} parent=5 // pred_fallthru
        _
    $region6: #{tpu_custom_call.1} parent=1 // loop_footer
      %s19 = sadd.s32 1, %s15
    $region7: #{tpu_custom_call.1} parent=1 // loop_footer_branch
      %14 = sbr.rel target = $region3
    $region8: #{tpu_custom_call.1} parent=1 // loop_exit
      _
    %564 = vsyncpa [#allocation3], 1
    %s565 = scalar_lea.sflag [#allocation3], 1
    %566 = vsyncpa %s565, 1
    %567 = vsyncpa [#allocation4], 1
    %s568 = scalar_lea.sflag [#allocation4], 1
    %569 = vsyncpa %s568, 1

</llo_original>
